<compile_context>
chip_gen: v7x
topology: tpu7x:2x2x1
jax: 0.10.0
libtpu: 0.0.40
codegen_flags: <defaults>
</compile_context>

<pallas_src>
import jax
import jax.numpy as jnp
from jax import lax
from jax.experimental import pallas as pl
from jax.experimental.pallas import tpu as pltpu

# Problem sizes (small, consistent with the module's forward).
B, S = 2, 8          # batch, encoder sequence length
V, E = 32, 16        # vocab size, embedding size
H, EH = 32, 32       # decoder hidden, encoder hidden
L = 2                # num LSTM layers


def decoder_step_kernel(
    tok_ref,       # (B, 1)   int32 token ids
    enc_ref,       # (B, S, EH)
    hid_ref,       # (L, B, H)
    cell_ref,      # (L, B, H)
    attn_w_ref,    # (H+EH, H)  = attn_W.T  (rows 0:H -> Wh.T, rows H: -> We.T)
    attn_bv_ref,   # (2, H)     row 0 = attn bias, row 1 = attn v
    w_ref,         # (V + EH + H + (L-1)*2H, 4H) packed LSTM weights, gates [i,f,o,g]
    b_ref,         # (L, 1, 4H) b_ih + b_hh, gate-reordered
    fc_ref,        # (H+1, V)   rows 0:H -> fc_w.T, row H -> fc_b
    logits_ref,    # out: (B, V)
    state_ref,     # out: (L, B, 2H)  [h | c] packed along lanes
):
  f32 = jnp.float32

  enc = enc_ref[...]                                      # (B, S, EH)
  h_top = hid_ref[L - 1]                                  # (B, H)

  # ---------------- Attention ----------------
  wh_t = attn_w_ref[:H, :]                                # (H, H)
  we_t = attn_w_ref[H:, :]                                # (EH, H)
  b_attn = attn_bv_ref[0:1, :]                            # (1, H)
  v_attn = attn_bv_ref[1:2, :]                            # (1, H)

  proj_h = jnp.dot(h_top, wh_t, preferred_element_type=f32) + b_attn      # (B, H)
  proj_e = jnp.dot(enc.reshape(B * S, EH), we_t,
                   preferred_element_type=f32).reshape(B, S, H)           # (B, S, H)
  energy = jnp.tanh(proj_e + proj_h[:, None, :])                          # (B, S, H)
  scores = jnp.sum(energy * v_attn[None, :, :], axis=-1)                  # (B, S)

  # softmax over the sequence axis
  scores_max = jnp.max(scores, axis=1, keepdims=True)
  exps = jnp.exp(scores - scores_max)
  attn = exps / jnp.sum(exps, axis=1, keepdims=True)                      # (B, S)

  # context = attn @ enc (batched MXU contraction)
  context = jnp.einsum('bqs,bse->bqe', attn[:, None, :], enc,
                       preferred_element_type=f32).reshape(B, EH)         # (B, EH)

  # ---------------- LSTM (seq_len == 1, L layers, gate order [i,f,o,g]) ----------------
  def gate_update(gates, c_prev):
    ifo = jax.nn.sigmoid(gates[:, :3 * H])                # one EUP push over 3H lanes
    g_g = jnp.tanh(gates[:, 3 * H:])                      # one EUP push over H lanes
    i_g = ifo[:, 0 * H:1 * H]
    f_g = ifo[:, 1 * H:2 * H]
    o_g = ifo[:, 2 * H:3 * H]
    c_new = f_g * c_prev + i_g * g_g
    h_new = o_g * jnp.tanh(c_new)
    return h_new, c_new

  # Layer 0: embedding table folded into the input weight host-side, so the gather
  # is a one-hot matmul (exact: one-hot selects a row of Emb @ W_ih0[:, :E].T).
  onehot = (lax.broadcasted_iota(jnp.int32, (B, V), 1)
            == tok_ref[...]).astype(f32)                  # (B, V)

  r = 0
  w0_emb = w_ref[r:r + V, :];  r += V                     # (V, 4H)
  w0_ctx = w_ref[r:r + EH, :]; r += EH                    # (EH, 4H)
  w0_hh = w_ref[r:r + H, :];   r += H                     # (H, 4H)

  gates = (jnp.dot(onehot, w0_emb, preferred_element_type=f32)
           + jnp.dot(context, w0_ctx, preferred_element_type=f32)
           + jnp.dot(hid_ref[0], w0_hh, preferred_element_type=f32)
           + b_ref[0])                                    # (B, 4H)
  h_x, c_x = gate_update(gates, cell_ref[0])
  state_ref[0] = jnp.concatenate([h_x, c_x], axis=1)      # (B, 2H)

  for l in range(1, L):                                   # inter-layer dropout is identity
    w_ih = w_ref[r:r + H, :]; r += H                      # (H, 4H)
    w_hh = w_ref[r:r + H, :]; r += H                      # (H, 4H)
    gates = (jnp.dot(h_x, w_ih, preferred_element_type=f32)
             + jnp.dot(hid_ref[l], w_hh, preferred_element_type=f32)
             + b_ref[l])
    h_x, c_x = gate_update(gates, cell_ref[l])
    state_ref[l] = jnp.concatenate([h_x, c_x], axis=1)

  # ---------------- Final projection ----------------
  logits_ref[...] = (jnp.dot(h_x, fc_ref[:H, :], preferred_element_type=f32)
                     + fc_ref[H:H + 1, :])


def decoder_lstm_forward(x_tok, encoder_outputs, hidden, cell, params):
  """Host-side weight repacking (pure layout work) + gridless pallas_call."""
  f32 = jnp.float32
  enc = encoder_outputs.astype(f32)                                  # (B, S, EH)

  # Reorder PyTorch LSTM gate rows [i, f, g, o] -> [i, f, o, g].
  gate_perm = jnp.concatenate([
      jnp.arange(0, H), jnp.arange(H, 2 * H),
      jnp.arange(3 * H, 4 * H), jnp.arange(2 * H, 3 * H)])

  w_ih0 = params['lstm_w_ih0'][gate_perm, :]                         # (4H, E+EH)
  # Fold embedding table into the layer-0 input weight (exact: one-hot row select).
  emb_w0 = jnp.dot(params['embedding'], w_ih0[:, :E].T,
                   precision=jax.lax.Precision.HIGHEST)              # (V, 4H)
  blocks = [emb_w0,
            w_ih0[:, E:].T,                                          # (EH, 4H)
            params['lstm_w_hh'][0][gate_perm, :].T]                  # (H, 4H)
  for l in range(1, L):
    blocks.append(params['lstm_w_ih_rest'][l - 1][gate_perm, :].T)   # (H, 4H)
    blocks.append(params['lstm_w_hh'][l][gate_perm, :].T)            # (H, 4H)
  lstm_w_pack = jnp.concatenate(blocks, axis=0)                      # (160, 4H)

  lstm_b = (params['lstm_b_ih'][:, gate_perm]
            + params['lstm_b_hh'][:, gate_perm]).reshape(L, 1, 4 * H)

  attn_w_t = params['attn_W'].T                                      # (H+EH, H)
  attn_bv = jnp.stack(
      [params['attn_b'], params['attn_v'].reshape(H)], axis=0)       # (2, H)

  fc_pack = jnp.concatenate(
      [params['fc_w'].T, params['fc_b'].reshape(1, V)], axis=0)      # (H+1, V)

  args = (x_tok.astype(jnp.int32), enc,
          hidden.astype(f32), cell.astype(f32),
          attn_w_t, attn_bv, lstm_w_pack, lstm_b, fc_pack)

  out_shape = (jax.ShapeDtypeStruct((B, V), f32),
               jax.ShapeDtypeStruct((L, B, 2 * H), f32))

  logits, state = pl.pallas_call(
      decoder_step_kernel,
      out_shape=out_shape,
      in_specs=[pl.BlockSpec(memory_space=pltpu.MemorySpace.VMEM) for _ in args],
      out_specs=(pl.BlockSpec(memory_space=pltpu.MemorySpace.VMEM),
                 pl.BlockSpec(memory_space=pltpu.MemorySpace.VMEM)),
  )(*args)

  hid_new = state[:, :, :H]
  cell_new = state[:, :, H:]
  return logits, hid_new, cell_new


def reference_forward(x_tok, enc, hidden, cell, p):
  """Pure-JAX reference matching the PyTorch forward (eval mode)."""
  emb = p['embedding'][x_tok[:, 0]]
  h_last = hidden[-1]
  h_exp = jnp.broadcast_to(h_last[:, None, :], (B, S, H))
  cat = jnp.concatenate([h_exp, enc], axis=2)
  energy = jnp.tanh(cat @ p['attn_W'].T + p['attn_b'])
  scores = (energy @ p['attn_v'].reshape(1, H).T)[..., 0]
  attn = jax.nn.softmax(scores, axis=1)
  context = jnp.einsum('bs,bse->be', attn, enc)
  x_in = jnp.concatenate([emb, context], axis=1)
  new_h, new_c = [], []
  for l in range(L):
    w_ih = p['lstm_w_ih0'] if l == 0 else p['lstm_w_ih_rest'][l - 1]
    gates = (x_in @ w_ih.T + p['lstm_b_ih'][l]
             + hidden[l] @ p['lstm_w_hh'][l].T + p['lstm_b_hh'][l])
    i, f, g, o = jnp.split(gates, 4, axis=1)
    c = jax.nn.sigmoid(f) * cell[l] + jax.nn.sigmoid(i) * jnp.tanh(g)
    h = jax.nn.sigmoid(o) * jnp.tanh(c)
    new_h.append(h)
    new_c.append(c)
    x_in = h
  logits = x_in @ p['fc_w'].T + p['fc_b']
  return logits, jnp.stack(new_h), jnp.stack(new_c)


if __name__ == "__main__":
  key = jax.random.PRNGKey(0)
  ks = jax.random.split(key, 16)

  def init(k, shape, scale=0.1):
    return (scale * jax.random.normal(k, shape)).astype(jnp.float32)

  params = {
      'embedding':      init(ks[0], (V, E)),
      'attn_W':         init(ks[1], (H, H + EH)),
      'attn_b':         init(ks[2], (H,)),
      'attn_v':         init(ks[3], (1, H)),
      'lstm_w_ih0':     init(ks[4], (4 * H, E + EH)),
      'lstm_w_ih_rest': init(ks[5], (L - 1, 4 * H, H)),
      'lstm_w_hh':      init(ks[6], (L, 4 * H, H)),
      'lstm_b_ih':      init(ks[7], (L, 4 * H)),
      'lstm_b_hh':      init(ks[8], (L, 4 * H)),
      'fc_w':           init(ks[9], (V, H)),
      'fc_b':           init(ks[10], (V,)),
  }

  x_tok = jax.random.randint(ks[11], (B, 1), 0, V, dtype=jnp.int32)
  encoder_outputs = init(ks[12], (B, S, EH), scale=1.0)
  hidden = init(ks[13], (L, B, H), scale=1.0)
  cell = init(ks[14], (L, B, H), scale=1.0)

  logits, hid_new, cell_new = jax.block_until_ready(
      decoder_lstm_forward(x_tok, encoder_outputs, hidden, cell, params))

  ref_logits, ref_hid, ref_cell = reference_forward(
      x_tok, encoder_outputs, hidden, cell, params)

  assert logits.shape == (B, V) and hid_new.shape == (L, B, H) and cell_new.shape == (L, B, H)
  assert jnp.allclose(logits, ref_logits, rtol=1e-5, atol=1e-5)
  assert jnp.allclose(hid_new, ref_hid, rtol=1e-5, atol=1e-5)
  assert jnp.allclose(cell_new, ref_cell, rtol=1e-5, atol=1e-5)

  print("KERNEL_OK")
</pallas_src>

<mosaic_0001>
module attributes {stable_mosaic.version = 11 : i64} {
  func.func @decoder_step_kernel(%arg0: memref<2x1xi32, #tpu.memory_space<vmem>>, %arg1: memref<2x8x32xf32, #tpu.memory_space<vmem>>, %arg2: memref<2x2x32xf32, #tpu.memory_space<vmem>>, %arg3: memref<2x2x32xf32, #tpu.memory_space<vmem>>, %arg4: memref<64x32xf32, #tpu.memory_space<vmem>>, %arg5: memref<2x32xf32, #tpu.memory_space<vmem>>, %arg6: memref<160x128xf32, #tpu.memory_space<vmem>>, %arg7: memref<2x1x128xf32, #tpu.memory_space<vmem>>, %arg8: memref<33x32xf32, #tpu.memory_space<vmem>>, %arg9: memref<2x32xf32, #tpu.memory_space<vmem>>, %arg10: memref<2x2x64xf32, #tpu.memory_space<vmem>>) attributes {dimension_semantics = [], scalar_prefetch = 0 : i64, scratch_operands = 0 : i64, tpu.core_type = #tpu.core_type<tc>} {
    %c0 = arith.constant 0 : index
    %c0_0 = arith.constant 0 : index
    %c0_1 = arith.constant 0 : index
    %0 = vector.load %arg1[%c0, %c0_0, %c0_1] : memref<2x8x32xf32, #tpu.memory_space<vmem>>, vector<2x8x32xf32>
    %c1 = arith.constant 1 : index
    %c0_2 = arith.constant 0 : index
    %c0_3 = arith.constant 0 : index
    %1 = vector.load %arg2[%c1, %c0_2, %c0_3] : memref<2x2x32xf32, #tpu.memory_space<vmem>>, vector<1x2x32xf32>
    %2 = vector.shape_cast %1 : vector<1x2x32xf32> to vector<2x32xf32>
    %c0_4 = arith.constant 0 : index
    %c0_5 = arith.constant 0 : index
    %3 = vector.load %arg4[%c0_4, %c0_5] : memref<64x32xf32, #tpu.memory_space<vmem>>, vector<32x32xf32>
    %c32 = arith.constant 32 : index
    %c0_6 = arith.constant 0 : index
    %4 = vector.load %arg4[%c32, %c0_6] : memref<64x32xf32, #tpu.memory_space<vmem>>, vector<32x32xf32>
    %c0_7 = arith.constant 0 : index
    %c0_8 = arith.constant 0 : index
    %5 = vector.load %arg5[%c0_7, %c0_8] : memref<2x32xf32, #tpu.memory_space<vmem>>, vector<1x32xf32>
    %c1_9 = arith.constant 1 : index
    %c0_10 = arith.constant 0 : index
    %6 = vector.load %arg5[%c1_9, %c0_10] : memref<2x32xf32, #tpu.memory_space<vmem>>, vector<1x32xf32>
    %cst = arith.constant dense<0.000000e+00> : vector<2x32xf32>
    %7 = tpu.matmul %2, %3, %cst {dimension_numbers = #tpu.dot_dimension_numbers<[1], [0], [0], [1], [0, 0, 1, 1], [], []>} : vector<2x32xf32>, vector<32x32xf32>, vector<2x32xf32> -> vector<2x32xf32>
    %8 = vector.broadcast %5 : vector<1x32xf32> to vector<2x32xf32>
    %9 = arith.addf %7, %8 : vector<2x32xf32>
    %10 = vector.shape_cast %0 : vector<2x8x32xf32> to vector<16x32xf32>
    %cst_11 = arith.constant dense<0.000000e+00> : vector<16x32xf32>
    %11 = tpu.matmul %10, %4, %cst_11 {dimension_numbers = #tpu.dot_dimension_numbers<[1], [0], [0], [1], [0, 0, 1, 1], [], []>} : vector<16x32xf32>, vector<32x32xf32>, vector<16x32xf32> -> vector<16x32xf32>
    %12 = vector.shape_cast %11 : vector<16x32xf32> to vector<2x8x32xf32>
    %13 = vector.shape_cast %9 : vector<2x32xf32> to vector<2x1x32xf32>
    %14 = vector.broadcast %13 : vector<2x1x32xf32> to vector<2x8x32xf32>
    %15 = arith.addf %12, %14 : vector<2x8x32xf32>
    %16 = math.tanh %15 : vector<2x8x32xf32>
    %17 = vector.shape_cast %6 : vector<1x32xf32> to vector<1x1x32xf32>
    %18 = vector.broadcast %17 : vector<1x1x32xf32> to vector<2x8x32xf32>
    %19 = arith.mulf %16, %18 : vector<2x8x32xf32>
    %cst_12 = arith.constant dense<0.000000e+00> : vector<2x8xf32>
    %20 = vector.multi_reduction <add>, %19, %cst_12 [2] : vector<2x8x32xf32> to vector<2x8xf32>
    %cst_13 = arith.constant dense<0xFF800000> : vector<2xf32>
    %21 = vector.multi_reduction <maximumf>, %20, %cst_13 [1] : vector<2x8xf32> to vector<2xf32>
    %22 = vector.shape_cast %21 : vector<2xf32> to vector<2x1xf32>
    %23 = vector.broadcast %22 : vector<2x1xf32> to vector<2x8xf32>
    %24 = arith.subf %20, %23 : vector<2x8xf32>
    %25 = math.exp %24 : vector<2x8xf32>
    %cst_14 = arith.constant dense<0.000000e+00> : vector<2xf32>
    %26 = vector.multi_reduction <add>, %25, %cst_14 [1] : vector<2x8xf32> to vector<2xf32>
    %27 = vector.shape_cast %26 : vector<2xf32> to vector<2x1xf32>
    %28 = vector.broadcast %27 : vector<2x1xf32> to vector<2x8xf32>
    %29 = arith.divf %25, %28 : vector<2x8xf32>
    %30 = vector.shape_cast %29 : vector<2x8xf32> to vector<2x1x8xf32>
    "tpu.trace_start"() <{level = 10 : i32, message = "bqs,bse->bqe"}> : () -> ()
    %cst_15 = arith.constant dense<0.000000e+00> : vector<2x1x32xf32>
    %31 = tpu.matmul %30, %0, %cst_15 {dimension_numbers = #tpu.dot_dimension_numbers<[2], [1], [1], [2], [0, 0, 0, 1, 1, 2], [0], [0]>} : vector<2x1x8xf32>, vector<2x8x32xf32>, vector<2x1x32xf32> -> vector<2x1x32xf32>
    "tpu.trace_stop"() : () -> ()
    %32 = vector.shape_cast %31 : vector<2x1x32xf32> to vector<2x32xf32>
    %33 = tpu.iota {dimensions = array<i32: 1>} : vector<2x32xi32>
    %c0_16 = arith.constant 0 : index
    %c0_17 = arith.constant 0 : index
    %34 = vector.load %arg0[%c0_16, %c0_17] : memref<2x1xi32, #tpu.memory_space<vmem>>, vector<2x1xi32>
    %35 = vector.broadcast %34 : vector<2x1xi32> to vector<2x32xi32>
    %36 = arith.cmpi eq, %33, %35 : vector<2x32xi32>
    %37 = arith.extui %36 : vector<2x32xi1> to vector<2x32xi32>
    %38 = arith.sitofp %37 : vector<2x32xi32> to vector<2x32xf32>
    %c0_18 = arith.constant 0 : index
    %c0_19 = arith.constant 0 : index
    %39 = vector.load %arg6[%c0_18, %c0_19] : memref<160x128xf32, #tpu.memory_space<vmem>>, vector<32x128xf32>
    %c32_20 = arith.constant 32 : index
    %c0_21 = arith.constant 0 : index
    %40 = vector.load %arg6[%c32_20, %c0_21] : memref<160x128xf32, #tpu.memory_space<vmem>>, vector<32x128xf32>
    %c64 = arith.constant 64 : index
    %c0_22 = arith.constant 0 : index
    %41 = vector.load %arg6[%c64, %c0_22] : memref<160x128xf32, #tpu.memory_space<vmem>>, vector<32x128xf32>
    %cst_23 = arith.constant dense<0.000000e+00> : vector<2x128xf32>
    %42 = tpu.matmul %38, %39, %cst_23 {dimension_numbers = #tpu.dot_dimension_numbers<[1], [0], [0], [1], [0, 0, 1, 1], [], []>} : vector<2x32xf32>, vector<32x128xf32>, vector<2x128xf32> -> vector<2x128xf32>
    %cst_24 = arith.constant dense<0.000000e+00> : vector<2x128xf32>
    %43 = tpu.matmul %32, %40, %cst_24 {dimension_numbers = #tpu.dot_dimension_numbers<[1], [0], [0], [1], [0, 0, 1, 1], [], []>} : vector<2x32xf32>, vector<32x128xf32>, vector<2x128xf32> -> vector<2x128xf32>
    %44 = arith.addf %42, %43 : vector<2x128xf32>
    %c0_25 = arith.constant 0 : index
    %c0_26 = arith.constant 0 : index
    %c0_27 = arith.constant 0 : index
    %45 = vector.load %arg2[%c0_25, %c0_26, %c0_27] : memref<2x2x32xf32, #tpu.memory_space<vmem>>, vector<1x2x32xf32>
    %46 = vector.shape_cast %45 : vector<1x2x32xf32> to vector<2x32xf32>
    %cst_28 = arith.constant dense<0.000000e+00> : vector<2x128xf32>
    %47 = tpu.matmul %46, %41, %cst_28 {dimension_numbers = #tpu.dot_dimension_numbers<[1], [0], [0], [1], [0, 0, 1, 1], [], []>} : vector<2x32xf32>, vector<32x128xf32>, vector<2x128xf32> -> vector<2x128xf32>
    %48 = arith.addf %44, %47 : vector<2x128xf32>
    %c0_29 = arith.constant 0 : index
    %c0_30 = arith.constant 0 : index
    %c0_31 = arith.constant 0 : index
    %49 = vector.load %arg7[%c0_29, %c0_30, %c0_31] : memref<2x1x128xf32, #tpu.memory_space<vmem>>, vector<1x1x128xf32>
    %50 = vector.shape_cast %49 : vector<1x1x128xf32> to vector<1x128xf32>
    %51 = vector.broadcast %50 : vector<1x128xf32> to vector<2x128xf32>
    %52 = arith.addf %48, %51 : vector<2x128xf32>
    %c0_32 = arith.constant 0 : index
    %c0_33 = arith.constant 0 : index
    %c0_34 = arith.constant 0 : index
    %53 = vector.load %arg3[%c0_32, %c0_33, %c0_34] : memref<2x2x32xf32, #tpu.memory_space<vmem>>, vector<1x2x32xf32>
    %54 = vector.shape_cast %53 : vector<1x2x32xf32> to vector<2x32xf32>
    %55 = vector.extract_strided_slice %52 {offsets = [0, 0], sizes = [2, 96], strides = [1, 1]} : vector<2x128xf32> to vector<2x96xf32>
    %56 = arith.negf %55 : vector<2x96xf32>
    %57 = math.exp %56 : vector<2x96xf32>
    %cst_35 = arith.constant 1.000000e+00 : f32
    %58 = vector.broadcast %cst_35 : f32 to vector<2x96xf32>
    %59 = arith.addf %58, %57 : vector<2x96xf32>
    %60 = arith.divf %58, %59 : vector<2x96xf32>
    %61 = vector.extract_strided_slice %52 {offsets = [0, 96], sizes = [2, 32], strides = [1, 1]} : vector<2x128xf32> to vector<2x32xf32>
    %62 = math.tanh %61 : vector<2x32xf32>
    %63 = vector.extract_strided_slice %60 {offsets = [0, 0], sizes = [2, 32], strides = [1, 1]} : vector<2x96xf32> to vector<2x32xf32>
    %64 = vector.extract_strided_slice %60 {offsets = [0, 32], sizes = [2, 32], strides = [1, 1]} : vector<2x96xf32> to vector<2x32xf32>
    %65 = vector.extract_strided_slice %60 {offsets = [0, 64], sizes = [2, 32], strides = [1, 1]} : vector<2x96xf32> to vector<2x32xf32>
    %66 = arith.mulf %64, %54 : vector<2x32xf32>
    %67 = arith.mulf %63, %62 : vector<2x32xf32>
    %68 = arith.addf %66, %67 : vector<2x32xf32>
    %69 = math.tanh %68 : vector<2x32xf32>
    %70 = arith.mulf %65, %69 : vector<2x32xf32>
    %71 = tpu.concatenate %70, %68 in 1 : vector<2x32xf32>, vector<2x32xf32> -> vector<2x64xf32>
    %c0_36 = arith.constant 0 : index
    %c0_37 = arith.constant 0 : index
    %c0_38 = arith.constant 0 : index
    %72 = vector.load %arg10[%c0_36, %c0_37, %c0_38] : memref<2x2x64xf32, #tpu.memory_space<vmem>>, vector<1x2x64xf32>
    %73 = vector.shape_cast %72 : vector<1x2x64xf32> to vector<2x64xf32>
    %74 = vector.shape_cast %71 : vector<2x64xf32> to vector<1x2x64xf32>
    tpu.vector_store %arg10[%c0_36, %c0_37, %c0_38], %74 {strides = array<i32>} : memref<2x2x64xf32, #tpu.memory_space<vmem>>, vector<1x2x64xf32>,
    %c96 = arith.constant 96 : index
    %c0_39 = arith.constant 0 : index
    %75 = vector.load %arg6[%c96, %c0_39] : memref<160x128xf32, #tpu.memory_space<vmem>>, vector<32x128xf32>
    %c128 = arith.constant 128 : index
    %c0_40 = arith.constant 0 : index
    %76 = vector.load %arg6[%c128, %c0_40] : memref<160x128xf32, #tpu.memory_space<vmem>>, vector<32x128xf32>
    %cst_41 = arith.constant dense<0.000000e+00> : vector<2x128xf32>
    %77 = tpu.matmul %70, %75, %cst_41 {dimension_numbers = #tpu.dot_dimension_numbers<[1], [0], [0], [1], [0, 0, 1, 1], [], []>} : vector<2x32xf32>, vector<32x128xf32>, vector<2x128xf32> -> vector<2x128xf32>
    %c1_42 = arith.constant 1 : index
    %c0_43 = arith.constant 0 : index
    %c0_44 = arith.constant 0 : index
    %78 = vector.load %arg2[%c1_42, %c0_43, %c0_44] : memref<2x2x32xf32, #tpu.memory_space<vmem>>, vector<1x2x32xf32>
    %79 = vector.shape_cast %78 : vector<1x2x32xf32> to vector<2x32xf32>
    %cst_45 = arith.constant dense<0.000000e+00> : vector<2x128xf32>
    %80 = tpu.matmul %79, %76, %cst_45 {dimension_numbers = #tpu.dot_dimension_numbers<[1], [0], [0], [1], [0, 0, 1, 1], [], []>} : vector<2x32xf32>, vector<32x128xf32>, vector<2x128xf32> -> vector<2x128xf32>
    %81 = arith.addf %77, %80 : vector<2x128xf32>
    %c1_46 = arith.constant 1 : index
    %c0_47 = arith.constant 0 : index
    %c0_48 = arith.constant 0 : index
    %82 = vector.load %arg7[%c1_46, %c0_47, %c0_48] : memref<2x1x128xf32, #tpu.memory_space<vmem>>, vector<1x1x128xf32>
    %83 = vector.shape_cast %82 : vector<1x1x128xf32> to vector<1x128xf32>
    %84 = vector.broadcast %83 : vector<1x128xf32> to vector<2x128xf32>
    %85 = arith.addf %81, %84 : vector<2x128xf32>
    %c1_49 = arith.constant 1 : index
    %c0_50 = arith.constant 0 : index
    %c0_51 = arith.constant 0 : index
    %86 = vector.load %arg3[%c1_49, %c0_50, %c0_51] : memref<2x2x32xf32, #tpu.memory_space<vmem>>, vector<1x2x32xf32>
    %87 = vector.shape_cast %86 : vector<1x2x32xf32> to vector<2x32xf32>
    %88 = vector.extract_strided_slice %85 {offsets = [0, 0], sizes = [2, 96], strides = [1, 1]} : vector<2x128xf32> to vector<2x96xf32>
    %89 = arith.negf %88 : vector<2x96xf32>
    %90 = math.exp %89 : vector<2x96xf32>
    %cst_52 = arith.constant 1.000000e+00 : f32
    %91 = vector.broadcast %cst_52 : f32 to vector<2x96xf32>
    %92 = arith.addf %91, %90 : vector<2x96xf32>
    %93 = arith.divf %91, %92 : vector<2x96xf32>
    %94 = vector.extract_strided_slice %85 {offsets = [0, 96], sizes = [2, 32], strides = [1, 1]} : vector<2x128xf32> to vector<2x32xf32>
    %95 = math.tanh %94 : vector<2x32xf32>
    %96 = vector.extract_strided_slice %93 {offsets = [0, 0], sizes = [2, 32], strides = [1, 1]} : vector<2x96xf32> to vector<2x32xf32>
    %97 = vector.extract_strided_slice %93 {offsets = [0, 32], sizes = [2, 32], strides = [1, 1]} : vector<2x96xf32> to vector<2x32xf32>
    %98 = vector.extract_strided_slice %93 {offsets = [0, 64], sizes = [2, 32], strides = [1, 1]} : vector<2x96xf32> to vector<2x32xf32>
    %99 = arith.mulf %97, %87 : vector<2x32xf32>
    %100 = arith.mulf %96, %95 : vector<2x32xf32>
    %101 = arith.addf %99, %100 : vector<2x32xf32>
    %102 = math.tanh %101 : vector<2x32xf32>
    %103 = arith.mulf %98, %102 : vector<2x32xf32>
    %104 = tpu.concatenate %103, %101 in 1 : vector<2x32xf32>, vector<2x32xf32> -> vector<2x64xf32>
    %c1_53 = arith.constant 1 : index
    %c0_54 = arith.constant 0 : index
    %c0_55 = arith.constant 0 : index
    %105 = vector.load %arg10[%c1_53, %c0_54, %c0_55] : memref<2x2x64xf32, #tpu.memory_space<vmem>>, vector<1x2x64xf32>
    %106 = vector.shape_cast %105 : vector<1x2x64xf32> to vector<2x64xf32>
    %107 = vector.shape_cast %104 : vector<2x64xf32> to vector<1x2x64xf32>
    tpu.vector_store %arg10[%c1_53, %c0_54, %c0_55], %107 {strides = array<i32>} : memref<2x2x64xf32, #tpu.memory_space<vmem>>, vector<1x2x64xf32>,
    %c0_56 = arith.constant 0 : index
    %c0_57 = arith.constant 0 : index
    %108 = vector.load %arg8[%c0_56, %c0_57] : memref<33x32xf32, #tpu.memory_space<vmem>>, vector<32x32xf32>
    %cst_58 = arith.constant dense<0.000000e+00> : vector<2x32xf32>
    %109 = tpu.matmul %103, %108, %cst_58 {dimension_numbers = #tpu.dot_dimension_numbers<[1], [0], [0], [1], [0, 0, 1, 1], [], []>} : vector<2x32xf32>, vector<32x32xf32>, vector<2x32xf32> -> vector<2x32xf32>
    %c32_59 = arith.constant 32 : index
    %c0_60 = arith.constant 0 : index
    %110 = vector.load %arg8[%c32_59, %c0_60] : memref<33x32xf32, #tpu.memory_space<vmem>>, vector<1x32xf32>
    %111 = vector.broadcast %110 : vector<1x32xf32> to vector<2x32xf32>
    %112 = arith.addf %109, %111 : vector<2x32xf32>
    %c0_61 = arith.constant 0 : index
    %c0_62 = arith.constant 0 : index
    %113 = vector.load %arg9[%c0_61, %c0_62] : memref<2x32xf32, #tpu.memory_space<vmem>>, vector<2x32xf32>
    tpu.vector_store %arg9[%c0_61, %c0_62], %112 {strides = array<i32>} : memref<2x32xf32, #tpu.memory_space<vmem>>, vector<2x32xf32>,
    return
  }
}

</mosaic_0001>

<llo_original>
// kernel: tpu_custom_call.1
$region0: #{tpu_custom_call.1}
  #allocation0 [shape = 'u32[]', space=smem, size = 0x4, offset = 0x4, fixed_abs, tag = 'smem constant byte address 0x4 - core index']
  #allocation1 [shape = 'u32[144,128]{1,0:T(1,128)}', space=vmem, size = 0x12000, scoped, tag = 'internal scratch']
  %s0 = inlined_call_operand.vmem [shape: s32[2,1], index: 0, kind: input, shape index: {}]
  %s1 = inlined_call_operand.hbm [shape: f32[2,8,32], index: 1, kind: input, shape index: {}]
  %s2 = inlined_call_operand.vmem [shape: f32[2,2,32], index: 2, kind: input, shape index: {}]
  %s3 = inlined_call_operand.vmem [shape: f32[2,2,32], index: 3, kind: input, shape index: {}]
  %s4 = inlined_call_operand.vmem [shape: f32[64,32], index: 4, kind: input, shape index: {}]
  %s5 = inlined_call_operand.vmem [shape: f32[2,32], index: 5, kind: input, shape index: {}]
  %s6 = inlined_call_operand.vmem [shape: f32[160,128], index: 6, kind: input, shape index: {}]
  %s7 = inlined_call_operand.hbm [shape: f32[2,1,128], index: 7, kind: input, shape index: {}]
  %s8 = inlined_call_operand.vmem [shape: f32[33,32], index: 8, kind: input, shape index: {}]
  %s9 = inlined_call_operand.hbm [shape: f32[2,32], index: 9, kind: output, shape index: {0}]
  %s10 = inlined_call_operand.hbm [shape: f32[2,2,64], index: 10, kind: output, shape index: {1}]
  %11 = xla_tuple %s9, %s10
  %s12 = sld [smem:[#allocation0]]
  $region62: #{tpu_custom_call.1} parent=0
    _
  %s14 = ssub.s32 1, %s12
  %s15 = scalar_select 0, %s14, %s12
  $region1: #{tpu_custom_call.1} parent=0
    #allocation2 [shape = 'u8[8192]{0}', space=vmem, size = 0x2000, scoped, tag = 'input window, operand 1, single buffered']
    #allocation3 [shape = 's32[1]{0}', space=sflag, size = 0x4, scoped, tag = 'scoped memory for tpu_custom_call.1']
    #allocation4 [shape = 's32[1]{0}', space=sflag, size = 0x4, scoped, tag = 'scoped memory for tpu_custom_call.1']
    #allocation5 [shape = 'u8[1024]{0}', space=vmem, size = 0x400, scoped, tag = 'input window, operand 7, single buffered']
    #allocation6 [shape = 's32[1]{0}', space=sflag, size = 0x4, scoped, tag = 'scoped memory for tpu_custom_call.1']
    #allocation7 [shape = 'u8[1024]{0}', space=vmem, size = 0x400, scoped, tag = 'output window, operand 0, single buffered']
    #allocation8 [shape = 'u8[2048]{0}', space=vmem, size = 0x800, scoped, tag = 'output window, operand 1, single buffered']
    #allocation9 [shape = 's32[1]{0}', space=sflag, size = 0x4, scoped, tag = 'scoped memory for tpu_custom_call.1']
    %16 = vsyncpa [#allocation3], 0
    %17 = vsyncpa [#allocation6], 0
    %18 = vsyncpa [#allocation4], 0
    %19 = vsyncpa [#allocation9], 0
    // Predicated region
    $region2: #{tpu_custom_call.1} parent=1 // pred_check
      _
    $region3: #{tpu_custom_call.1} parent=1 // pred_check_branch
      %21 = sbr.rel (0) target = $region5
    $region4: #{tpu_custom_call.1} parent=1 // pred_region
      _
    $region5: #{tpu_custom_call.1} parent=1 // pred_fallthru
      _
    // Predicated region
    $region6: #{tpu_custom_call.1} parent=1 // pred_check
      _
    $region7: #{tpu_custom_call.1} parent=1 // pred_check_branch
      %23 = sbr.rel (0) target = $region9
    $region8: #{tpu_custom_call.1} parent=1 // pred_region
      %s25 = ssub.s32 256, 256
      %26 = vsyncadd [#allocation3], %s25
      %s27 = sshll.u32 [#allocation2], 4
      %s28 = int_to_ptr.vmem [resolvable:$true] %s27
      %33 = dma.hbm_to_vmem [thread:$0]  %s1, 256, %s28, [#allocation3], 128, 128, 8
    $region9: #{tpu_custom_call.1} parent=1 // pred_fallthru
      _
    // Predicated region
    $region10: #{tpu_custom_call.1} parent=1 // pred_check
      _
    $region11: #{tpu_custom_call.1} parent=1 // pred_check_branch
      %35 = sbr.rel (0) target = $region13
    $region12: #{tpu_custom_call.1} parent=1 // pred_region
      _
    $region13: #{tpu_custom_call.1} parent=1 // pred_fallthru
      _
    // Predicated region
    $region14: #{tpu_custom_call.1} parent=1 // pred_check
      _
    $region15: #{tpu_custom_call.1} parent=1 // pred_check_branch
      %37 = sbr.rel (0) target = $region17
    $region16: #{tpu_custom_call.1} parent=1 // pred_region
      _
    $region17: #{tpu_custom_call.1} parent=1 // pred_fallthru
      _
    // Predicated region
    $region18: #{tpu_custom_call.1} parent=1 // pred_check
      _
    $region19: #{tpu_custom_call.1} parent=1 // pred_check_branch
      %39 = sbr.rel (0) target = $region21
    $region20: #{tpu_custom_call.1} parent=1 // pred_region
      _
    $region21: #{tpu_custom_call.1} parent=1 // pred_fallthru
      _
    // Predicated region
    $region22: #{tpu_custom_call.1} parent=1 // pred_check
      _
    $region23: #{tpu_custom_call.1} parent=1 // pred_check_branch
      %41 = sbr.rel (0) target = $region25
    $region24: #{tpu_custom_call.1} parent=1 // pred_region
      _
    $region25: #{tpu_custom_call.1} parent=1 // pred_fallthru
      _
    // Predicated region
    $region26: #{tpu_custom_call.1} parent=1 // pred_check
      _
    $region27: #{tpu_custom_call.1} parent=1 // pred_check_branch
      %43 = sbr.rel (0) target = $region29
    $region28: #{tpu_custom_call.1} parent=1 // pred_region
      _
    $region29: #{tpu_custom_call.1} parent=1 // pred_fallthru
      _
    // Predicated region
    $region30: #{tpu_custom_call.1} parent=1 // pred_check
      _
    $region31: #{tpu_custom_call.1} parent=1 // pred_check_branch
      %45 = sbr.rel (0) target = $region33
    $region32: #{tpu_custom_call.1} parent=1 // pred_region
      %s47 = ssub.s32 32, 32
      %48 = vsyncadd [#allocation6], %s47
      %s49 = sshll.u32 [#allocation5], 4
      %s50 = int_to_ptr.vmem [resolvable:$true] %s49
      %55 = dma.hbm_to_vmem [thread:$0]  %s7, 32, %s50, [#allocation6], 16, 16, 1
    $region33: #{tpu_custom_call.1} parent=1 // pred_fallthru
      _
    // Predicated region
    $region34: #{tpu_custom_call.1} parent=1 // pred_check
      _
    $region35: #{tpu_custom_call.1} parent=1 // pred_check_branch
      %57 = sbr.rel (0) target = $region37
    $region36: #{tpu_custom_call.1} parent=1 // pred_region
      _
    $region37: #{tpu_custom_call.1} parent=1 // pred_fallthru
      _
    // Predicated region
    $region38: #{tpu_custom_call.1} parent=1 // pred_check
      _
    $region39: #{tpu_custom_call.1} parent=1 // pred_check_branch
      %59 = sbr.rel (0) target = $region41
    $region40: #{tpu_custom_call.1} parent=1 // pred_region
      %60 = dma.done [#allocation3], 256
    $region41: #{tpu_custom_call.1} parent=1 // pred_fallthru
      _
    // Predicated region
    $region42: #{tpu_custom_call.1} parent=1 // pred_check
      _
    $region43: #{tpu_custom_call.1} parent=1 // pred_check_branch
      %62 = sbr.rel (0) target = $region45
    $region44: #{tpu_custom_call.1} parent=1 // pred_region
      %63 = dma.done [#allocation6], 32
    $region45: #{tpu_custom_call.1} parent=1 // pred_fallthru
      _
    %v64 = vld [vmem:[#allocation2] sm:$0xff]
    %v65 = vld [vmem:[#allocation2 + $0x8] sm:$0xff]
    %s66 = scalar_lea.vmem %s2, 2
    %v67 = vld [vmem:[%s66] sm:$0x3]
    %v68 = vld [vmem:[%s4] sm:$0xff]
    %v69 = vld [vmem:[%s4 + $0x8] sm:$0xff]
    %v70 = vld [vmem:[%s4 + $0x10] sm:$0xff]
    %v71 = vld [vmem:[%s4 + $0x18] sm:$0xff]
    %v72 = vld [vmem:[%s4 + $0x20] sm:$0xff]
    %v73 = vld [vmem:[%s4 + $0x28] sm:$0xff]
    %v74 = vld [vmem:[%s4 + $0x30] sm:$0xff]
    %v75 = vld [vmem:[%s4 + $0x38] sm:$0xff]
    %v76 = vld [vmem:[%s5] sm:$0x1]
    %v77 = vld [vmem:[%s5 + $0x1] sm:$0x1]
    %v78 = vlaneseq
    %v79 = vshrl.u32 %v78, 7
    %v80 = vsub.s32 0, %v79
    %v81 = vrot.slane %v76, %v80
    %vm82 = vcmask 261120
    %v84 = vsel %vm82, %v67, 0
    %86 = vmatprep.subr.mxu0 0.0
    %87 = vmatpush1.msra.mxu0 %v68
    %88 = vmatprep.subr.mxu0 0.0
    %89 = vmatpush1.msra.mxu0 %v69
    %90 = vmatprep.subr.mxu0 0.0
    %91 = vmatpush1.msra.mxu0 %v70
    %92 = vmatprep.subr.mxu0 0.0
    %93 = vmatpush1.msra.mxu0 %v71
    %94 = vmatprep.subr.mxu0 0.0
    %95 = vmatpush1.msra.mxu0 0.0
    %96 = vmatprep.subr.mxu0 0.0
    %97 = vmatpush1.msra.mxu0 0.0
    %98 = vmatprep.subr.mxu0 0.0
    %99 = vmatpush1.msra.mxu0 0.0
    %100 = vmatprep.subr.mxu0 0.0
    %101 = vmatpush1.msra.mxu0 0.0
    %102 = vmatprep.subr.mxu0 0.0
    %103 = vmatpush1.msra.mxu0 0.0
    %104 = vmatprep.subr.mxu0 0.0
    %105 = vmatpush1.msra.mxu0 0.0
    %106 = vmatprep.subr.mxu0 0.0
    %107 = vmatpush1.msra.mxu0 0.0
    %108 = vmatprep.subr.mxu0 0.0
    %109 = vmatpush1.msra.mxu0 0.0
    %110 = vmatprep.subr.mxu0 0.0
    %111 = vmatpush1.msra.mxu0 0.0
    %112 = vmatprep.subr.mxu0 0.0
    %113 = vmatpush1.msra.mxu0 0.0
    %114 = vmatprep.subr.mxu0 0.0
    %115 = vmatpush1.msra.mxu0 0.0
    %116 = vmatprep.subr.mxu0 0.0
    %117 = vmatpush1.msra.mxu0 0.0
    %118 = vmatprep.subr.mxu0 0.0
    %119 = vmatpush1.msra.mxu0 0.0
    %120 = vmatprep.subr.mxu0 0.0
    %121 = vmatpush1.msra.mxu0 0.0
    %122 = vmatprep.subr.mxu0 0.0
    %123 = vmatpush1.msra.mxu0 0.0
    %124 = vmatprep.subr.mxu0 0.0
    %125 = vmatpush1.msra.mxu0 0.0
    %126 = vmatprep.subr.mxu0 0.0
    %127 = vmatpush1.msra.mxu0 0.0
    %128 = vmatprep.subr.mxu0 0.0
    %129 = vmatpush1.msra.mxu0 0.0
    %130 = vmatprep.subr.mxu0 0.0
    %131 = vmatpush1.msra.mxu0 0.0
    %132 = vmatprep.subr.mxu0 0.0
    %133 = vmatpush1.msra.mxu0 0.0
    %134 = vmatprep.subr.mxu0 0.0
    %135 = vmatpush1.msra.mxu0 0.0
    %136 = vmatprep.subr.mxu0 0.0
    %137 = vmatpush1.msra.mxu0 0.0
    %138 = vmatprep.subr.mxu0 0.0
    %139 = vmatpush1.msra.mxu0 0.0
    %140 = vmatprep.subr.mxu0 0.0
    %141 = vmatpush1.msra.mxu0 0.0
    %142 = vmatprep.subr.mxu0 0.0
    %143 = vmatpush1.msra.mxu0 0.0
    %144 = vmatprep.subr.mxu0 0.0
    %145 = vmatpush1.msra.mxu0 0.0
    %146 = vmatprep.subr.mxu0 0.0
    %147 = vmatpush1.msra.mxu0 0.0
    %148 = vmatprep.subr.mxu0 0.0
    %149 = vmatpush1.msra.mxu0 0.0
    %150 = vmatprep.mubr.f32.mxu0 0.0
    %151 = vmatmul.mubr.f32.gmra.mrb[0].mxu0 %v84
    %v152 = vpop.f32.mrb[0].mxu0
    %v153 = vadd.f32 %v81, %v152
    %v154 = vpop.f32.mrb[0].mxu0
    %155 = vdwg.mxu0
    %v157 = vsel %vm82, %v64, 0
    %v160 = vsel %vm82, %v65, 0
    %162 = vmatprep.subr.mxu0 0.0
    %163 = vmatpush1.msra.mxu0 %v72
    %164 = vmatprep.subr.mxu0 0.0
    %165 = vmatpush1.msra.mxu0 %v73
    %166 = vmatprep.subr.mxu0 0.0
    %167 = vmatpush1.msra.mxu0 %v74
    %168 = vmatprep.subr.mxu0 0.0
    %169 = vmatpush1.msra.mxu0 %v75
    %170 = vmatprep.subr.mxu0 0.0
    %171 = vmatpush1.msra.mxu0 0.0
    %172 = vmatprep.subr.mxu0 0.0
    %173 = vmatpush1.msra.mxu0 0.0
    %174 = vmatprep.subr.mxu0 0.0
    %175 = vmatpush1.msra.mxu0 0.0
    %176 = vmatprep.subr.mxu0 0.0
    %177 = vmatpush1.msra.mxu0 0.0
    %178 = vmatprep.subr.mxu0 0.0
    %179 = vmatpush1.msra.mxu0 0.0
    %180 = vmatprep.subr.mxu0 0.0
    %181 = vmatpush1.msra.mxu0 0.0
    %182 = vmatprep.subr.mxu0 0.0
    %183 = vmatpush1.msra.mxu0 0.0
    %184 = vmatprep.subr.mxu0 0.0
    %185 = vmatpush1.msra.mxu0 0.0
    %186 = vmatprep.subr.mxu0 0.0
    %187 = vmatpush1.msra.mxu0 0.0
    %188 = vmatprep.subr.mxu0 0.0
    %189 = vmatpush1.msra.mxu0 0.0
    %190 = vmatprep.subr.mxu0 0.0
    %191 = vmatpush1.msra.mxu0 0.0
    %192 = vmatprep.subr.mxu0 0.0
    %193 = vmatpush1.msra.mxu0 0.0
    %194 = vmatprep.subr.mxu0 0.0
    %195 = vmatpush1.msra.mxu0 0.0
    %196 = vmatprep.subr.mxu0 0.0
    %197 = vmatpush1.msra.mxu0 0.0
    %198 = vmatprep.subr.mxu0 0.0
    %199 = vmatpush1.msra.mxu0 0.0
    %200 = vmatprep.subr.mxu0 0.0
    %201 = vmatpush1.msra.mxu0 0.0
    %202 = vmatprep.subr.mxu0 0.0
    %203 = vmatpush1.msra.mxu0 0.0
    %204 = vmatprep.subr.mxu0 0.0
    %205 = vmatpush1.msra.mxu0 0.0
    %206 = vmatprep.subr.mxu0 0.0
    %207 = vmatpush1.msra.mxu0 0.0
    %208 = vmatprep.subr.mxu0 0.0
    %209 = vmatpush1.msra.mxu0 0.0
    %210 = vmatprep.subr.mxu0 0.0
    %211 = vmatpush1.msra.mxu0 0.0
    %212 = vmatprep.subr.mxu0 0.0
    %213 = vmatpush1.msra.mxu0 0.0
    %214 = vmatprep.subr.mxu0 0.0
    %215 = vmatpush1.msra.mxu0 0.0
    %216 = vmatprep.subr.mxu0 0.0
    %217 = vmatpush1.msra.mxu0 0.0
    %218 = vmatprep.subr.mxu0 0.0
    %219 = vmatpush1.msra.mxu0 0.0
    %220 = vmatprep.subr.mxu0 0.0
    %221 = vmatpush1.msra.mxu0 0.0
    %222 = vmatprep.subr.mxu0 0.0
    %223 = vmatpush1.msra.mxu0 0.0
    %224 = vmatprep.subr.mxu0 0.0
    %225 = vmatpush1.msra.mxu0 0.0
    %226 = vmatprep.mubr.f32.mxu0 0.0
    %227 = vmatmul.mubr.f32.gmra.mrb[0].mxu0 %v157
    %v228 = vpop.f32.mrb[0].mxu0
    %v229 = vadd.f32 0.0, %v228
    %v230 = vpop.f32.mrb[0].mxu0
    %231 = vmatprep.mubr.f32.mxu0 0.0
    %232 = vmatmul.mubr.f32.gmra.mrb[0].mxu0 %v160
    %v233 = vpop.f32.mrb[0].mxu0
    %v234 = vadd.f32 0.0, %v233
    %v235 = vpop.f32.mrb[0].mxu0
    %236 = vdwg.mxu0
    %v239 = vunpack.c.l.s4 1966171168
    %v240 = vunpack.c.0.s8 %v239
    %v241 = vlaneseq
    %v242 = vshrl.u32 %v241, 7
    %v243 = vsub.s32 %v240, %v242
    %v244 = vrot.slane %v153, %v243
    %v245 = vcombine.high %v244, %v244
    %v247 = vunpack.c.l.s4 1966171168
    %v248 = vunpack.c.0.s8 %v247
    %v249 = vlaneseq
    %v250 = vshrl.u32 %v249, 7
    %v251 = vsub.s32 %v248, %v250
    %v252 = vrot.slane %v244, %v251
    %v254 = vunpack.c.l.s4 1966171168
    %v255 = vunpack.c.0.s8 %v254
    %v256 = vlaneseq
    %v257 = vshrl.u32 %v256, 7
    %v258 = vsub.s32 %v255, %v257
    %v259 = vrot.slane %v245, %v258
    %v260 = vlaneseq
    %v261 = vshrl.u32 %v260, 7
    %v262 = vsub.s32 0, %v261
    %v263 = vrot.slane %v252, %v262
    %v264 = vlaneseq
    %v265 = vshrl.u32 %v264, 7
    %v266 = vsub.s32 0, %v265
    %v267 = vrot.slane %v259, %v266
    %v270 = vadd.f32 %v229, %v263
    %v271 = vadd.f32 %v234, %v267
    %v272 = vtanh.pop %v270
    %v273 = vtanh.pop %v271
    %v274 = vlaneseq
    %v275 = vshrl.u32 %v274, 7
    %v276 = vsub.s32 0, %v275
    %v277 = vrot.slane %v77, %v276
    %v278 = vmul.f32 %v272, %v277
    %v279 = vmul.f32 %v273, %v277
    %v280 = vsel %vm82, %v278, 0.0
    %281 = vadd.xlane.f32.xlu0 %v280
    %v282 = vpop.xlane.xlu0 %281
    %v283 = vsel %vm82, %v279, 0.0
    %284 = vadd.xlane.f32.xlu0 %v283
    %v285 = vpop.xlane.xlu0 %284
    %v288 = vlaneseq
    %v289 = vand.u32 %v288, 127
    %v290 = vlaneseq
    %v291 = vshrl.u32 %v290, 7
    %v292 = vsub.s32 %v289, %v291
    %v293 = vrot.slane %v282, %v292
    %v294 = vlaneseq
    %v295 = vshrl.u32 %v294, 7
    %v296 = vsub.s32 %v289, %v295
    %v297 = vrot.slane %v285, %v296
    %vm298 = vcmask 1041409
    %v299 = vsel %vm298, %v297, %v293
    %vm301 = vcmask 58368
    %v302 = vsel %vm301, %v299, -inf
    %303 = vmax.xlane.f32.xlu0 %v302
    %v304 = vpop.xlane.xlu0 %303
    %v306 = vlaneseq
    %v307 = vshrl.u32 %v306, 7
    %v308 = vsub.s32 0, %v307
    %v309 = vrot.slane %v304, %v308
    %v310 = vlaneseq
    %v311 = vshrl.u32 %v310, 7
    %v312 = vsub.s32 1, %v311
    %v313 = vrot.slane %v304, %v312
    %v316 = vsub.f32 %v282, %v309
    %v317 = vsub.f32 %v285, %v313
    %v318 = vmul.f32 %v316, 1.442695
    %v319 = vpow.pop %v318
    %v320 = vmul.f32 %v317, 1.442695
    %v321 = vpow.pop %v320
    %324 = vset.pattern.permute.xlu0 0
    %325 = vperm.xlu0 %324, %v319
    %v326 = vpop.permute.xlu0 %325
    %327 = vset.pattern.permute.xlu0 0
    %328 = vperm.xlu0 %327, %v321
    %v329 = vpop.permute.xlu0 %328
    %v330 = vlaneseq
    %v331 = vshrl.u32 %v330, 7
    %v332 = vsub.s32 %v289, %v331
    %v333 = vrot.slane %v326, %v332
    %v334 = vlaneseq
    %v335 = vshrl.u32 %v334, 7
    %v336 = vsub.s32 %v289, %v335
    %v337 = vrot.slane %v329, %v336
    %v338 = vsel %vm298, %v337, %v333
    %v340 = vsel %vm301, %v338, 0.0
    %341 = vadd.xlane.f32.xlu0 %v340
    %v342 = vpop.xlane.xlu0 %341
    %v344 = vlaneseq
    %v345 = vshrl.u32 %v344, 7
    %v346 = vsub.s32 0, %v345
    %v347 = vrot.slane %v342, %v346
    %v348 = vlaneseq
    %v349 = vshrl.u32 %v348, 7
    %v350 = vsub.s32 1, %v349
    %v351 = vrot.slane %v342, %v350
    %v354 = vrcp.pop %v347
    %v355 = vmul.f32 %v319, %v354
    %v356 = vrcp.pop %v351
    %v357 = vmul.f32 %v321, %v356
    %359 = vset.pattern.permute.xlu0 0
    %360 = vperm.xlu0 %359, %v355
    %v361 = vpop.permute.xlu0 %360
    %v362 = vlaneseq
    %v363 = vshrl.u32 %v362, 7
    %v364 = vsub.s32 %v289, %v363
    %v365 = vrot.slane %v361, %v364
    %vm366 = vcmask 64512
    %v367 = vsel %vm366, %v365, 0
    %369 = vmatprep.subr.mxu0 0.0
    %370 = vmatpush1.msra.mxu0 %v64
    %371 = vmatprep.subr.mxu0 0.0
    %372 = vmatpush1.msra.mxu0 0.0
    %373 = vmatprep.subr.mxu0 0.0
    %374 = vmatpush1.msra.mxu0 0.0
    %375 = vmatprep.subr.mxu0 0.0
    %376 = vmatpush1.msra.mxu0 0.0
    %377 = vmatprep.subr.mxu0 0.0
    %378 = vmatpush1.msra.mxu0 0.0
    %379 = vmatprep.subr.mxu0 0.0
    %380 = vmatpush1.msra.mxu0 0.0
    %381 = vmatprep.subr.mxu0 0.0
    %382 = vmatpush1.msra.mxu0 0.0
    %383 = vmatprep.subr.mxu0 0.0
    %384 = vmatpush1.msra.mxu0 0.0
    %385 = vmatprep.subr.mxu0 0.0
    %386 = vmatpush1.msra.mxu0 0.0
    %387 = vmatprep.subr.mxu0 0.0
    %388 = vmatpush1.msra.mxu0 0.0
    %389 = vmatprep.subr.mxu0 0.0
    %390 = vmatpush1.msra.mxu0 0.0
    %391 = vmatprep.subr.mxu0 0.0
    %392 = vmatpush1.msra.mxu0 0.0
    %393 = vmatprep.subr.mxu0 0.0
    %394 = vmatpush1.msra.mxu0 0.0
    %395 = vmatprep.subr.mxu0 0.0
    %396 = vmatpush1.msra.mxu0 0.0
    %397 = vmatprep.subr.mxu0 0.0
    %398 = vmatpush1.msra.mxu0 0.0
    %399 = vmatprep.subr.mxu0 0.0
    %400 = vmatpush1.msra.mxu0 0.0
    %401 = vmatprep.subr.mxu0 0.0
    %402 = vmatpush1.msra.mxu0 0.0
    %403 = vmatprep.subr.mxu0 0.0
    %404 = vmatpush1.msra.mxu0 0.0
    %405 = vmatprep.subr.mxu0 0.0
    %406 = vmatpush1.msra.mxu0 0.0
    %407 = vmatprep.subr.mxu0 0.0
    %408 = vmatpush1.msra.mxu0 0.0
    %409 = vmatprep.subr.mxu0 0.0
    %410 = vmatpush1.msra.mxu0 0.0
    %411 = vmatprep.subr.mxu0 0.0
    %412 = vmatpush1.msra.mxu0 0.0
    %413 = vmatprep.subr.mxu0 0.0
    %414 = vmatpush1.msra.mxu0 0.0
    %415 = vmatprep.subr.mxu0 0.0
    %416 = vmatpush1.msra.mxu0 0.0
    %417 = vmatprep.subr.mxu0 0.0
    %418 = vmatpush1.msra.mxu0 0.0
    %419 = vmatprep.subr.mxu0 0.0
    %420 = vmatpush1.msra.mxu0 0.0
    %421 = vmatprep.subr.mxu0 0.0
    %422 = vmatpush1.msra.mxu0 0.0
    %423 = vmatprep.subr.mxu0 0.0
    %424 = vmatpush1.msra.mxu0 0.0
    %425 = vmatprep.subr.mxu0 0.0
    %426 = vmatpush1.msra.mxu0 0.0
    %427 = vmatprep.subr.mxu0 0.0
    %428 = vmatpush1.msra.mxu0 0.0
    %429 = vmatprep.subr.mxu0 0.0
    %430 = vmatpush1.msra.mxu0 0.0
    %431 = vmatprep.subr.mxu0 0.0
    %432 = vmatpush1.msra.mxu0 0.0
    %433 = vmatprep.mubr.f32.mxu0 0.0
    %434 = vmatmul.mubr.f32.gmra.mrb[0].mxu0 %v367
    %v435 = vpop.f32.mrb[0].mxu0
    %v436 = vadd.f32 0.0, %v435
    %v437 = vpop.f32.mrb[0].mxu0
    %438 = vdwg.mxu0
    %440 = vset.pattern.permute.xlu0 0
    %441 = vperm.xlu0 %440, %v357
    %v442 = vpop.permute.xlu0 %441
    %v443 = vlaneseq
    %v444 = vshrl.u32 %v443, 7
    %v445 = vsub.s32 %v289, %v444
    %v446 = vrot.slane %v442, %v445
    %v447 = vsel %vm366, %v446, 0
    %449 = vmatprep.subr.mxu0 0.0
    %450 = vmatpush1.msra.mxu0 %v65
    %451 = vmatprep.subr.mxu0 0.0
    %452 = vmatpush1.msra.mxu0 0.0
    %453 = vmatprep.subr.mxu0 0.0
    %454 = vmatpush1.msra.mxu0 0.0
    %455 = vmatprep.subr.mxu0 0.0
    %456 = vmatpush1.msra.mxu0 0.0
    %457 = vmatprep.subr.mxu0 0.0
    %458 = vmatpush1.msra.mxu0 0.0
    %459 = vmatprep.subr.mxu0 0.0
    %460 = vmatpush1.msra.mxu0 0.0
    %461 = vmatprep.subr.mxu0 0.0
    %462 = vmatpush1.msra.mxu0 0.0
    %463 = vmatprep.subr.mxu0 0.0
    %464 = vmatpush1.msra.mxu0 0.0
    %465 = vmatprep.subr.mxu0 0.0
    %466 = vmatpush1.msra.mxu0 0.0
    %467 = vmatprep.subr.mxu0 0.0
    %468 = vmatpush1.msra.mxu0 0.0
    %469 = vmatprep.subr.mxu0 0.0
    %470 = vmatpush1.msra.mxu0 0.0
    %471 = vmatprep.subr.mxu0 0.0
    %472 = vmatpush1.msra.mxu0 0.0
    %473 = vmatprep.subr.mxu0 0.0
    %474 = vmatpush1.msra.mxu0 0.0
    %475 = vmatprep.subr.mxu0 0.0
    %476 = vmatpush1.msra.mxu0 0.0
    %477 = vmatprep.subr.mxu0 0.0
    %478 = vmatpush1.msra.mxu0 0.0
    %479 = vmatprep.subr.mxu0 0.0
    %480 = vmatpush1.msra.mxu0 0.0
    %481 = vmatprep.subr.mxu0 0.0
    %482 = vmatpush1.msra.mxu0 0.0
    %483 = vmatprep.subr.mxu0 0.0
    %484 = vmatpush1.msra.mxu0 0.0
    %485 = vmatprep.subr.mxu0 0.0
    %486 = vmatpush1.msra.mxu0 0.0
    %487 = vmatprep.subr.mxu0 0.0
    %488 = vmatpush1.msra.mxu0 0.0
    %489 = vmatprep.subr.mxu0 0.0
    %490 = vmatpush1.msra.mxu0 0.0
    %491 = vmatprep.subr.mxu0 0.0
    %492 = vmatpush1.msra.mxu0 0.0
    %493 = vmatprep.subr.mxu0 0.0
    %494 = vmatpush1.msra.mxu0 0.0
    %495 = vmatprep.subr.mxu0 0.0
    %496 = vmatpush1.msra.mxu0 0.0
    %497 = vmatprep.subr.mxu0 0.0
    %498 = vmatpush1.msra.mxu0 0.0
    %499 = vmatprep.subr.mxu0 0.0
    %500 = vmatpush1.msra.mxu0 0.0
    %501 = vmatprep.subr.mxu0 0.0
    %502 = vmatpush1.msra.mxu0 0.0
    %503 = vmatprep.subr.mxu0 0.0
    %504 = vmatpush1.msra.mxu0 0.0
    %505 = vmatprep.subr.mxu0 0.0
    %506 = vmatpush1.msra.mxu0 0.0
    %507 = vmatprep.subr.mxu0 0.0
    %508 = vmatpush1.msra.mxu0 0.0
    %509 = vmatprep.subr.mxu0 0.0
    %510 = vmatpush1.msra.mxu0 0.0
    %511 = vmatprep.subr.mxu0 0.0
    %512 = vmatpush1.msra.mxu0 0.0
    %513 = vmatprep.mubr.f32.mxu0 0.0
    %514 = vmatmul.mubr.f32.gmra.mrb[0].mxu0 %v447
    %v515 = vpop.f32.mrb[0].mxu0
    %v516 = vadd.f32 0.0, %v515
    %v517 = vpop.f32.mrb[0].mxu0
    %518 = vdwg.mxu0
    %v519 = vld [vmem:[%s0] sm:$0x3]
    %520 = vset.pattern.permute.xlu0 0
    %521 = vperm.xlu0 %520, %v519
    %v522 = vpop.permute.xlu0 %521
    %vm523 = vcmp.eq.s32.totalorder %v289, %v522
    %v524 = vsel %vm523, 1, 0
    %v525 = vcvt.s32.f32 %v524
    %v526 = vld [vmem:[%s6] sm:$0xff]
    %v527 = vld [vmem:[%s6 + $0x8] sm:$0xff]
    %v528 = vld [vmem:[%s6 + $0x10] sm:$0xff]
    %v529 = vld [vmem:[%s6 + $0x18] sm:$0xff]
    %v530 = vld [vmem:[%s6 + $0x20] sm:$0xff]
    %v531 = vld [vmem:[%s6 + $0x28] sm:$0xff]
    %v532 = vld [vmem:[%s6 + $0x30] sm:$0xff]
    %v533 = vld [vmem:[%s6 + $0x38] sm:$0xff]
    %v534 = vld [vmem:[%s6 + $0x40] sm:$0xff]
    %v535 = vld [vmem:[%s6 + $0x48] sm:$0xff]
    %v536 = vld [vmem:[%s6 + $0x50] sm:$0xff]
    %v537 = vld [vmem:[%s6 + $0x58] sm:$0xff]
    %v540 = vrot.slane %v516, 7
    %v541 = vsel %vm298, %v540, %v436
    %v542 = vsel %vm82, %v541, 0
    %544 = vmatprep.subr.mxu0 0.0
    %545 = vmatpush1.msra.mxu0 %v530
    %546 = vmatprep.subr.mxu0 0.0
    %547 = vmatpush1.msra.mxu0 %v531
    %548 = vmatprep.subr.mxu0 0.0
    %549 = vmatpush1.msra.mxu0 %v532
    %550 = vmatprep.subr.mxu0 0.0
    %551 = vmatpush1.msra.mxu0 %v533
    %552 = vmatprep.subr.mxu0 0.0
    %553 = vmatpush1.msra.mxu0 0.0
    %554 = vmatprep.subr.mxu0 0.0
    %555 = vmatpush1.msra.mxu0 0.0
    %556 = vmatprep.subr.mxu0 0.0
    %557 = vmatpush1.msra.mxu0 0.0
    %558 = vmatprep.subr.mxu0 0.0
    %559 = vmatpush1.msra.mxu0 0.0
    %560 = vmatprep.subr.mxu0 0.0
    %561 = vmatpush1.msra.mxu0 0.0
    %562 = vmatprep.subr.mxu0 0.0
    %563 = vmatpush1.msra.mxu0 0.0
    %564 = vmatprep.subr.mxu0 0.0
    %565 = vmatpush1.msra.mxu0 0.0
    %566 = vmatprep.subr.mxu0 0.0
    %567 = vmatpush1.msra.mxu0 0.0
    %568 = vmatprep.subr.mxu0 0.0
    %569 = vmatpush1.msra.mxu0 0.0
    %570 = vmatprep.subr.mxu0 0.0
    %571 = vmatpush1.msra.mxu0 0.0
    %572 = vmatprep.subr.mxu0 0.0
    %573 = vmatpush1.msra.mxu0 0.0
    %574 = vmatprep.subr.mxu0 0.0
    %575 = vmatpush1.msra.mxu0 0.0
    %576 = vmatprep.subr.mxu0 0.0
    %577 = vmatpush1.msra.mxu0 0.0
    %578 = vmatprep.subr.mxu0 0.0
    %579 = vmatpush1.msra.mxu0 0.0
    %580 = vmatprep.subr.mxu0 0.0
    %581 = vmatpush1.msra.mxu0 0.0
    %582 = vmatprep.subr.mxu0 0.0
    %583 = vmatpush1.msra.mxu0 0.0
    %584 = vmatprep.subr.mxu0 0.0
    %585 = vmatpush1.msra.mxu0 0.0
    %586 = vmatprep.subr.mxu0 0.0
    %587 = vmatpush1.msra.mxu0 0.0
    %588 = vmatprep.subr.mxu0 0.0
    %589 = vmatpush1.msra.mxu0 0.0
    %590 = vmatprep.subr.mxu0 0.0
    %591 = vmatpush1.msra.mxu0 0.0
    %592 = vmatprep.subr.mxu0 0.0
    %593 = vmatpush1.msra.mxu0 0.0
    %594 = vmatprep.subr.mxu0 0.0
    %595 = vmatpush1.msra.mxu0 0.0
    %596 = vmatprep.subr.mxu0 0.0
    %597 = vmatpush1.msra.mxu0 0.0
    %598 = vmatprep.subr.mxu0 0.0
    %599 = vmatpush1.msra.mxu0 0.0
    %600 = vmatprep.subr.mxu0 0.0
    %601 = vmatpush1.msra.mxu0 0.0
    %602 = vmatprep.subr.mxu0 0.0
    %603 = vmatpush1.msra.mxu0 0.0
    %604 = vmatprep.subr.mxu0 0.0
    %605 = vmatpush1.msra.mxu0 0.0
    %606 = vmatprep.subr.mxu0 0.0
    %607 = vmatpush1.msra.mxu0 0.0
    %608 = vmatprep.mubr.f32.mxu0 0.0
    %609 = vmatmul.mubr.f32.gmra.mrb[0].mxu0 %v542
    %v610 = vpop.f32.mrb[0].mxu0
    %v611 = vadd.f32 0.0, %v610
    %v612 = vpop.f32.mrb[0].mxu0
    %613 = vdwg.mxu0
    %v615 = vsel %vm82, %v525, 0
    %617 = vmatprep.subr.mxu0 0.0
    %618 = vmatpush1.msra.mxu0 %v526
    %619 = vmatprep.subr.mxu0 0.0
    %620 = vmatpush1.msra.mxu0 %v527
    %621 = vmatprep.subr.mxu0 0.0
    %622 = vmatpush1.msra.mxu0 %v528
    %623 = vmatprep.subr.mxu0 0.0
    %624 = vmatpush1.msra.mxu0 %v529
    %625 = vmatprep.subr.mxu0 0.0
    %626 = vmatpush1.msra.mxu0 0.0
    %627 = vmatprep.subr.mxu0 0.0
    %628 = vmatpush1.msra.mxu0 0.0
    %629 = vmatprep.subr.mxu0 0.0
    %630 = vmatpush1.msra.mxu0 0.0
    %631 = vmatprep.subr.mxu0 0.0
    %632 = vmatpush1.msra.mxu0 0.0
    %633 = vmatprep.subr.mxu0 0.0
    %634 = vmatpush1.msra.mxu0 0.0
    %635 = vmatprep.subr.mxu0 0.0
    %636 = vmatpush1.msra.mxu0 0.0
    %637 = vmatprep.subr.mxu0 0.0
    %638 = vmatpush1.msra.mxu0 0.0
    %639 = vmatprep.subr.mxu0 0.0
    %640 = vmatpush1.msra.mxu0 0.0
    %641 = vmatprep.subr.mxu0 0.0
    %642 = vmatpush1.msra.mxu0 0.0
    %643 = vmatprep.subr.mxu0 0.0
    %644 = vmatpush1.msra.mxu0 0.0
    %645 = vmatprep.subr.mxu0 0.0
    %646 = vmatpush1.msra.mxu0 0.0
    %647 = vmatprep.subr.mxu0 0.0
    %648 = vmatpush1.msra.mxu0 0.0
    %649 = vmatprep.subr.mxu0 0.0
    %650 = vmatpush1.msra.mxu0 0.0
    %651 = vmatprep.subr.mxu0 0.0
    %652 = vmatpush1.msra.mxu0 0.0
    %653 = vmatprep.subr.mxu0 0.0
    %654 = vmatpush1.msra.mxu0 0.0
    %655 = vmatprep.subr.mxu0 0.0
    %656 = vmatpush1.msra.mxu0 0.0
    %657 = vmatprep.subr.mxu0 0.0
    %658 = vmatpush1.msra.mxu0 0.0
    %659 = vmatprep.subr.mxu0 0.0
    %660 = vmatpush1.msra.mxu0 0.0
    %661 = vmatprep.subr.mxu0 0.0
    %662 = vmatpush1.msra.mxu0 0.0
    %663 = vmatprep.subr.mxu0 0.0
    %664 = vmatpush1.msra.mxu0 0.0
    %665 = vmatprep.subr.mxu0 0.0
    %666 = vmatpush1.msra.mxu0 0.0
    %667 = vmatprep.subr.mxu0 0.0
    %668 = vmatpush1.msra.mxu0 0.0
    %669 = vmatprep.subr.mxu0 0.0
    %670 = vmatpush1.msra.mxu0 0.0
    %671 = vmatprep.subr.mxu0 0.0
    %672 = vmatpush1.msra.mxu0 0.0
    %673 = vmatprep.subr.mxu0 0.0
    %674 = vmatpush1.msra.mxu0 0.0
    %675 = vmatprep.subr.mxu0 0.0
    %676 = vmatpush1.msra.mxu0 0.0
    %677 = vmatprep.subr.mxu0 0.0
    %678 = vmatpush1.msra.mxu0 0.0
    %679 = vmatprep.subr.mxu0 0.0
    %680 = vmatpush1.msra.mxu0 0.0
    %681 = vmatprep.mubr.f32.mxu0 0.0
    %682 = vmatmul.mubr.f32.gmra.mrb[0].mxu0 %v615
    %v683 = vpop.f32.mrb[0].mxu0
    %v684 = vadd.f32 %v611, %v683
    %v685 = vpop.f32.mrb[0].mxu0
    %686 = vdwg.mxu0
    %v687 = vld [vmem:[%s2] sm:$0x3]
    %v689 = vsel %vm82, %v687, 0
    %691 = vmatprep.subr.mxu0 0.0
    %692 = vmatpush1.msra.mxu0 %v534
    %693 = vmatprep.subr.mxu0 0.0
    %694 = vmatpush1.msra.mxu0 %v535
    %695 = vmatprep.subr.mxu0 0.0
    %696 = vmatpush1.msra.mxu0 %v536
    %697 = vmatprep.subr.mxu0 0.0
    %698 = vmatpush1.msra.mxu0 %v537
    %699 = vmatprep.subr.mxu0 0.0
    %700 = vmatpush1.msra.mxu0 0.0
    %701 = vmatprep.subr.mxu0 0.0
    %702 = vmatpush1.msra.mxu0 0.0
    %703 = vmatprep.subr.mxu0 0.0
    %704 = vmatpush1.msra.mxu0 0.0
    %705 = vmatprep.subr.mxu0 0.0
    %706 = vmatpush1.msra.mxu0 0.0
    %707 = vmatprep.subr.mxu0 0.0
    %708 = vmatpush1.msra.mxu0 0.0
    %709 = vmatprep.subr.mxu0 0.0
    %710 = vmatpush1.msra.mxu0 0.0
    %711 = vmatprep.subr.mxu0 0.0
    %712 = vmatpush1.msra.mxu0 0.0
    %713 = vmatprep.subr.mxu0 0.0
    %714 = vmatpush1.msra.mxu0 0.0
    %715 = vmatprep.subr.mxu0 0.0
    %716 = vmatpush1.msra.mxu0 0.0
    %717 = vmatprep.subr.mxu0 0.0
    %718 = vmatpush1.msra.mxu0 0.0
    %719 = vmatprep.subr.mxu0 0.0
    %720 = vmatpush1.msra.mxu0 0.0
    %721 = vmatprep.subr.mxu0 0.0
    %722 = vmatpush1.msra.mxu0 0.0
    %723 = vmatprep.subr.mxu0 0.0
    %724 = vmatpush1.msra.mxu0 0.0
    %725 = vmatprep.subr.mxu0 0.0
    %726 = vmatpush1.msra.mxu0 0.0
    %727 = vmatprep.subr.mxu0 0.0
    %728 = vmatpush1.msra.mxu0 0.0
    %729 = vmatprep.subr.mxu0 0.0
    %730 = vmatpush1.msra.mxu0 0.0
    %731 = vmatprep.subr.mxu0 0.0
    %732 = vmatpush1.msra.mxu0 0.0
    %733 = vmatprep.subr.mxu0 0.0
    %734 = vmatpush1.msra.mxu0 0.0
    %735 = vmatprep.subr.mxu0 0.0
    %736 = vmatpush1.msra.mxu0 0.0
    %737 = vmatprep.subr.mxu0 0.0
    %738 = vmatpush1.msra.mxu0 0.0
    %739 = vmatprep.subr.mxu0 0.0
    %740 = vmatpush1.msra.mxu0 0.0
    %741 = vmatprep.subr.mxu0 0.0
    %742 = vmatpush1.msra.mxu0 0.0
    %743 = vmatprep.subr.mxu0 0.0
    %744 = vmatpush1.msra.mxu0 0.0
    %745 = vmatprep.subr.mxu0 0.0
    %746 = vmatpush1.msra.mxu0 0.0
    %747 = vmatprep.subr.mxu0 0.0
    %748 = vmatpush1.msra.mxu0 0.0
    %749 = vmatprep.subr.mxu0 0.0
    %750 = vmatpush1.msra.mxu0 0.0
    %751 = vmatprep.subr.mxu0 0.0
    %752 = vmatpush1.msra.mxu0 0.0
    %753 = vmatprep.subr.mxu0 0.0
    %754 = vmatpush1.msra.mxu0 0.0
    %755 = vmatprep.mubr.f32.mxu0 0.0
    %756 = vmatmul.mubr.f32.gmra.mrb[0].mxu0 %v689
    %v757 = vpop.f32.mrb[0].mxu0
    %v758 = vadd.f32 0.0, %v757
    %v759 = vpop.f32.mrb[0].mxu0
    %760 = vdwg.mxu0
    %v761 = vadd.f32 %v684, %v758
    %v762 = vld [vmem:[#allocation5] sm:$0x1]
    %v764 = vlaneseq
    %v765 = vshrl.u32 %v764, 7
    %v766 = vsub.s32 0, %v765
    %v767 = vrot.slane %v762, %v766
    %v769 = vadd.f32 %v761, %v767
    %v770 = vld [vmem:[%s3] sm:$0x3]
    %v771 = vxor.u32 %v769, 2147483648
    %v772 = vmul.f32 %v771, 1.442695
    %v773 = vpow.pop %v772
    %v774 = vadd.f32 %v773, 1.0
    %v775 = vrcp.pop %v774
    %v776 = vmul.f32 1.0, %v775
    %v777 = vtanh.pop %v769
    %779 = vrot.lane.b32.xlu0 %v770, 32
    %v780 = vpop.permute.xlu0 %779
    %v782 = vmul.f32 %v776, %v780
    %784 = vrot.lane.b32.xlu0 %v777, 32
    %v785 = vpop.permute.xlu0 %784
    %v787 = vmul.f32 %v776, %v785
    %789 = vrot.lane.b32.xlu0 %v787, 32
    %v790 = vpop.permute.xlu0 %789
    %v792 = vadd.f32 %v782, %v790
    %v793 = vtanh.pop %v792
    %795 = vrot.lane.b32.xlu0 %v793, 32
    %v796 = vpop.permute.xlu0 %795
    %v798 = vmul.f32 %v776, %v796
    %800 = vrot.lane.b32.xlu0 %v798, 64
    %v801 = vpop.permute.xlu0 %800
    %v803 = vsel %vm82, %v801, %v792
    %vm804 = vcmask 517120
    %805 = vst.msk [vmem:[#allocation8] sm:$0x3] %vm804, %v803
    %v806 = vld [vmem:[%s6 + $0x60] sm:$0xff]
    %v807 = vld [vmem:[%s6 + $0x68] sm:$0xff]
    %v808 = vld [vmem:[%s6 + $0x70] sm:$0xff]
    %v809 = vld [vmem:[%s6 + $0x78] sm:$0xff]
    %v810 = vld [vmem:[%s6 + $0x80] sm:$0xff]
    %v811 = vld [vmem:[%s6 + $0x88] sm:$0xff]
    %v812 = vld [vmem:[%s6 + $0x90] sm:$0xff]
    %v813 = vld [vmem:[%s6 + $0x98] sm:$0xff]
    %v814 = vld [vmem:[%s66] sm:$0x3]
    %v816 = vsel %vm82, %v814, 0
    %818 = vmatprep.subr.mxu0 0.0
    %819 = vmatpush1.msra.mxu0 %v810
    %820 = vmatprep.subr.mxu0 0.0
    %821 = vmatpush1.msra.mxu0 %v811
    %822 = vmatprep.subr.mxu0 0.0
    %823 = vmatpush1.msra.mxu0 %v812
    %824 = vmatprep.subr.mxu0 0.0
    %825 = vmatpush1.msra.mxu0 %v813
    %826 = vmatprep.subr.mxu0 0.0
    %827 = vmatpush1.msra.mxu0 0.0
    %828 = vmatprep.subr.mxu0 0.0
    %829 = vmatpush1.msra.mxu0 0.0
    %830 = vmatprep.subr.mxu0 0.0
    %831 = vmatpush1.msra.mxu0 0.0
    %832 = vmatprep.subr.mxu0 0.0
    %833 = vmatpush1.msra.mxu0 0.0
    %834 = vmatprep.subr.mxu0 0.0
    %835 = vmatpush1.msra.mxu0 0.0
    %836 = vmatprep.subr.mxu0 0.0
    %837 = vmatpush1.msra.mxu0 0.0
    %838 = vmatprep.subr.mxu0 0.0
    %839 = vmatpush1.msra.mxu0 0.0
    %840 = vmatprep.subr.mxu0 0.0
    %841 = vmatpush1.msra.mxu0 0.0
    %842 = vmatprep.subr.mxu0 0.0
    %843 = vmatpush1.msra.mxu0 0.0
    %844 = vmatprep.subr.mxu0 0.0
    %845 = vmatpush1.msra.mxu0 0.0
    %846 = vmatprep.subr.mxu0 0.0
    %847 = vmatpush1.msra.mxu0 0.0
    %848 = vmatprep.subr.mxu0 0.0
    %849 = vmatpush1.msra.mxu0 0.0
    %850 = vmatprep.subr.mxu0 0.0
    %851 = vmatpush1.msra.mxu0 0.0
    %852 = vmatprep.subr.mxu0 0.0
    %853 = vmatpush1.msra.mxu0 0.0
    %854 = vmatprep.subr.mxu0 0.0
    %855 = vmatpush1.msra.mxu0 0.0
    %856 = vmatprep.subr.mxu0 0.0
    %857 = vmatpush1.msra.mxu0 0.0
    %858 = vmatprep.subr.mxu0 0.0
    %859 = vmatpush1.msra.mxu0 0.0
    %860 = vmatprep.subr.mxu0 0.0
    %861 = vmatpush1.msra.mxu0 0.0
    %862 = vmatprep.subr.mxu0 0.0
    %863 = vmatpush1.msra.mxu0 0.0
    %864 = vmatprep.subr.mxu0 0.0
    %865 = vmatpush1.msra.mxu0 0.0
    %866 = vmatprep.subr.mxu0 0.0
    %867 = vmatpush1.msra.mxu0 0.0
    %868 = vmatprep.subr.mxu0 0.0
    %869 = vmatpush1.msra.mxu0 0.0
    %870 = vmatprep.subr.mxu0 0.0
    %871 = vmatpush1.msra.mxu0 0.0
    %872 = vmatprep.subr.mxu0 0.0
    %873 = vmatpush1.msra.mxu0 0.0
    %874 = vmatprep.subr.mxu0 0.0
    %875 = vmatpush1.msra.mxu0 0.0
    %876 = vmatprep.subr.mxu0 0.0
    %877 = vmatpush1.msra.mxu0 0.0
    %878 = vmatprep.subr.mxu0 0.0
    %879 = vmatpush1.msra.mxu0 0.0
    %880 = vmatprep.subr.mxu0 0.0
    %881 = vmatpush1.msra.mxu0 0.0
    %882 = vmatprep.mubr.f32.mxu0 0.0
    %883 = vmatmul.mubr.f32.gmra.mrb[0].mxu0 %v816
    %v884 = vpop.f32.mrb[0].mxu0
    %v885 = vadd.f32 0.0, %v884
    %v886 = vpop.f32.mrb[0].mxu0
    %887 = vdwg.mxu0
    %v888 = vsel %vm82, %v801, 0
    %890 = vmatprep.subr.mxu0 0.0
    %891 = vmatpush1.msra.mxu0 %v806
    %892 = vmatprep.subr.mxu0 0.0
    %893 = vmatpush1.msra.mxu0 %v807
    %894 = vmatprep.subr.mxu0 0.0
    %895 = vmatpush1.msra.mxu0 %v808
    %896 = vmatprep.subr.mxu0 0.0
    %897 = vmatpush1.msra.mxu0 %v809
    %898 = vmatprep.subr.mxu0 0.0
    %899 = vmatpush1.msra.mxu0 0.0
    %900 = vmatprep.subr.mxu0 0.0
    %901 = vmatpush1.msra.mxu0 0.0
    %902 = vmatprep.subr.mxu0 0.0
    %903 = vmatpush1.msra.mxu0 0.0
    %904 = vmatprep.subr.mxu0 0.0
    %905 = vmatpush1.msra.mxu0 0.0
    %906 = vmatprep.subr.mxu0 0.0
    %907 = vmatpush1.msra.mxu0 0.0
    %908 = vmatprep.subr.mxu0 0.0
    %909 = vmatpush1.msra.mxu0 0.0
    %910 = vmatprep.subr.mxu0 0.0
    %911 = vmatpush1.msra.mxu0 0.0
    %912 = vmatprep.subr.mxu0 0.0
    %913 = vmatpush1.msra.mxu0 0.0
    %914 = vmatprep.subr.mxu0 0.0
    %915 = vmatpush1.msra.mxu0 0.0
    %916 = vmatprep.subr.mxu0 0.0
    %917 = vmatpush1.msra.mxu0 0.0
    %918 = vmatprep.subr.mxu0 0.0
    %919 = vmatpush1.msra.mxu0 0.0
    %920 = vmatprep.subr.mxu0 0.0
    %921 = vmatpush1.msra.mxu0 0.0
    %922 = vmatprep.subr.mxu0 0.0
    %923 = vmatpush1.msra.mxu0 0.0
    %924 = vmatprep.subr.mxu0 0.0
    %925 = vmatpush1.msra.mxu0 0.0
    %926 = vmatprep.subr.mxu0 0.0
    %927 = vmatpush1.msra.mxu0 0.0
    %928 = vmatprep.subr.mxu0 0.0
    %929 = vmatpush1.msra.mxu0 0.0
    %930 = vmatprep.subr.mxu0 0.0
    %931 = vmatpush1.msra.mxu0 0.0
    %932 = vmatprep.subr.mxu0 0.0
    %933 = vmatpush1.msra.mxu0 0.0
    %934 = vmatprep.subr.mxu0 0.0
    %935 = vmatpush1.msra.mxu0 0.0
    %936 = vmatprep.subr.mxu0 0.0
    %937 = vmatpush1.msra.mxu0 0.0
    %938 = vmatprep.subr.mxu0 0.0
    %939 = vmatpush1.msra.mxu0 0.0
    %940 = vmatprep.subr.mxu0 0.0
    %941 = vmatpush1.msra.mxu0 0.0
    %942 = vmatprep.subr.mxu0 0.0
    %943 = vmatpush1.msra.mxu0 0.0
    %944 = vmatprep.subr.mxu0 0.0
    %945 = vmatpush1.msra.mxu0 0.0
    %946 = vmatprep.subr.mxu0 0.0
    %947 = vmatpush1.msra.mxu0 0.0
    %948 = vmatprep.subr.mxu0 0.0
    %949 = vmatpush1.msra.mxu0 0.0
    %950 = vmatprep.subr.mxu0 0.0
    %951 = vmatpush1.msra.mxu0 0.0
    %952 = vmatprep.subr.mxu0 0.0
    %953 = vmatpush1.msra.mxu0 0.0
    %954 = vmatprep.mubr.f32.mxu0 0.0
    %955 = vmatmul.mubr.f32.gmra.mrb[0].mxu0 %v888
    %v956 = vpop.f32.mrb[0].mxu0
    %v957 = vadd.f32 %v885, %v956
    %v958 = vpop.f32.mrb[0].mxu0
    %959 = vdwg.mxu0
    %s960 = scalar_lea.vmem [#allocation5], 1
    %v961 = vld [vmem:[%s960] sm:$0x1]
    %v963 = vlaneseq
    %v964 = vshrl.u32 %v963, 7
    %v965 = vsub.s32 0, %v964
    %v966 = vrot.slane %v961, %v965
    %v968 = vadd.f32 %v957, %v966
    %s969 = scalar_lea.vmem %s3, 2
    %v970 = vld [vmem:[%s969] sm:$0x3]
    %v971 = vxor.u32 %v968, 2147483648
    %v972 = vmul.f32 %v971, 1.442695
    %v973 = vpow.pop %v972
    %v974 = vadd.f32 %v973, 1.0
    %v975 = vrcp.pop %v974
    %v976 = vmul.f32 1.0, %v975
    %v977 = vtanh.pop %v968
    %979 = vrot.lane.b32.xlu0 %v970, 32
    %v980 = vpop.permute.xlu0 %979
    %v982 = vmul.f32 %v976, %v980
    %984 = vrot.lane.b32.xlu0 %v977, 32
    %v985 = vpop.permute.xlu0 %984
    %v987 = vmul.f32 %v976, %v985
    %989 = vrot.lane.b32.xlu0 %v987, 32
    %v990 = vpop.permute.xlu0 %989
    %v992 = vadd.f32 %v982, %v990
    %v993 = vtanh.pop %v992
    %995 = vrot.lane.b32.xlu0 %v993, 32
    %v996 = vpop.permute.xlu0 %995
    %v998 = vmul.f32 %v976, %v996
    %1000 = vrot.lane.b32.xlu0 %v998, 64
    %v1001 = vpop.permute.xlu0 %1000
    %v1003 = vsel %vm82, %v1001, %v992
    %s1004 = scalar_lea.vmem [#allocation8], 2
    %1005 = vst.msk [vmem:[%s1004] sm:$0x3] %vm804, %v1003
    %v1006 = vld [vmem:[%s8] sm:$0xff]
    %v1007 = vld [vmem:[%s8 + $0x8] sm:$0xff]
    %v1008 = vld [vmem:[%s8 + $0x10] sm:$0xff]
    %v1009 = vld [vmem:[%s8 + $0x18] sm:$0xff]
    %v1010 = vld [vmem:[%s8 + $0x20] sm:$0x1]
    %v1011 = vlaneseq
    %v1012 = vshrl.u32 %v1011, 7
    %v1013 = vsub.s32 0, %v1012
    %v1014 = vrot.slane %v1010, %v1013
    %v1015 = vsel %vm82, %v1001, 0
    %1017 = vmatprep.subr.mxu0 0.0
    %1018 = vmatpush1.msra.mxu0 %v1006
    %1019 = vmatprep.subr.mxu0 0.0
    %1020 = vmatpush1.msra.mxu0 %v1007
    %1021 = vmatprep.subr.mxu0 0.0
    %1022 = vmatpush1.msra.mxu0 %v1008
    %1023 = vmatprep.subr.mxu0 0.0
    %1024 = vmatpush1.msra.mxu0 %v1009
    %1025 = vmatprep.subr.mxu0 0.0
    %1026 = vmatpush1.msra.mxu0 0.0
    %1027 = vmatprep.subr.mxu0 0.0
    %1028 = vmatpush1.msra.mxu0 0.0
    %1029 = vmatprep.subr.mxu0 0.0
    %1030 = vmatpush1.msra.mxu0 0.0
    %1031 = vmatprep.subr.mxu0 0.0
    %1032 = vmatpush1.msra.mxu0 0.0
    %1033 = vmatprep.subr.mxu0 0.0
    %1034 = vmatpush1.msra.mxu0 0.0
    %1035 = vmatprep.subr.mxu0 0.0
    %1036 = vmatpush1.msra.mxu0 0.0
    %1037 = vmatprep.subr.mxu0 0.0
    %1038 = vmatpush1.msra.mxu0 0.0
    %1039 = vmatprep.subr.mxu0 0.0
    %1040 = vmatpush1.msra.mxu0 0.0
    %1041 = vmatprep.subr.mxu0 0.0
    %1042 = vmatpush1.msra.mxu0 0.0
    %1043 = vmatprep.subr.mxu0 0.0
    %1044 = vmatpush1.msra.mxu0 0.0
    %1045 = vmatprep.subr.mxu0 0.0
    %1046 = vmatpush1.msra.mxu0 0.0
    %1047 = vmatprep.subr.mxu0 0.0
    %1048 = vmatpush1.msra.mxu0 0.0
    %1049 = vmatprep.subr.mxu0 0.0
    %1050 = vmatpush1.msra.mxu0 0.0
    %1051 = vmatprep.subr.mxu0 0.0
    %1052 = vmatpush1.msra.mxu0 0.0
    %1053 = vmatprep.subr.mxu0 0.0
    %1054 = vmatpush1.msra.mxu0 0.0
    %1055 = vmatprep.subr.mxu0 0.0
    %1056 = vmatpush1.msra.mxu0 0.0
    %1057 = vmatprep.subr.mxu0 0.0
    %1058 = vmatpush1.msra.mxu0 0.0
    %1059 = vmatprep.subr.mxu0 0.0
    %1060 = vmatpush1.msra.mxu0 0.0
    %1061 = vmatprep.subr.mxu0 0.0
    %1062 = vmatpush1.msra.mxu0 0.0
    %1063 = vmatprep.subr.mxu0 0.0
    %1064 = vmatpush1.msra.mxu0 0.0
    %1065 = vmatprep.subr.mxu0 0.0
    %1066 = vmatpush1.msra.mxu0 0.0
    %1067 = vmatprep.subr.mxu0 0.0
    %1068 = vmatpush1.msra.mxu0 0.0
    %1069 = vmatprep.subr.mxu0 0.0
    %1070 = vmatpush1.msra.mxu0 0.0
    %1071 = vmatprep.subr.mxu0 0.0
    %1072 = vmatpush1.msra.mxu0 0.0
    %1073 = vmatprep.subr.mxu0 0.0
    %1074 = vmatpush1.msra.mxu0 0.0
    %1075 = vmatprep.subr.mxu0 0.0
    %1076 = vmatpush1.msra.mxu0 0.0
    %1077 = vmatprep.subr.mxu0 0.0
    %1078 = vmatpush1.msra.mxu0 0.0
    %1079 = vmatprep.subr.mxu0 0.0
    %1080 = vmatpush1.msra.mxu0 0.0
    %1081 = vmatprep.mubr.f32.mxu0 0.0
    %1082 = vmatmul.mubr.f32.gmra.mrb[0].mxu0 %v1015
    %v1083 = vpop.f32.mrb[0].mxu0
    %v1084 = vadd.f32 %v1014, %v1083
    %v1085 = vpop.f32.mrb[0].mxu0
    %1086 = vdwg.mxu0
    %vm1087 = vcmask 254976
    %1088 = vst.msk [vmem:[#allocation7] sm:$0x3] %vm1087, %v1084
    // Predicated region
    $region46: #{tpu_custom_call.1} parent=1 // pred_check
      _
    $region47: #{tpu_custom_call.1} parent=1 // pred_check_branch
      %1090 = sbr.rel (0) target = $region49
    $region48: #{tpu_custom_call.1} parent=1 // pred_region
      %s1092 = ssub.s32 32, 32
      %1093 = vsyncadd [#allocation4], %s1092
      %s1095 = sshll.u32 [#allocation7], 4
      %s1096 = int_to_ptr.vmem [resolvable:$true] %s1095
      %1098 = dma.vmem_to_hbm [thread:$0]  %s1096, 32, %s9, [#allocation4]
    $region49: #{tpu_custom_call.1} parent=1 // pred_fallthru
      _
    // Predicated region
    $region50: #{tpu_custom_call.1} parent=1 // pred_check
      _
    $region51: #{tpu_custom_call.1} parent=1 // pred_check_branch
      %1100 = sbr.rel (0) target = $region53
    $region52: #{tpu_custom_call.1} parent=1 // pred_region
      %s1102 = ssub.s32 64, 64
      %1103 = vsyncadd [#allocation9], %s1102
      %s1104 = sshll.u32 [#allocation8], 4
      %s1105 = int_to_ptr.vmem [resolvable:$true] %s1104
      %1110 = dma.vmem_to_hbm [thread:$0]  %s1105, 64, %s10, [#allocation9], 32, 32, 2
    $region53: #{tpu_custom_call.1} parent=1 // pred_fallthru
      _
    // Predicated region
    $region54: #{tpu_custom_call.1} parent=1 // pred_check
      _
    $region55: #{tpu_custom_call.1} parent=1 // pred_check_branch
      %1112 = sbr.rel (0) target = $region57
    $region56: #{tpu_custom_call.1} parent=1 // pred_region
      %1113 = dma.done [#allocation4], 32
    $region57: #{tpu_custom_call.1} parent=1 // pred_fallthru
      _
    // Predicated region
    $region58: #{tpu_custom_call.1} parent=1 // pred_check
      _
    $region59: #{tpu_custom_call.1} parent=1 // pred_check_branch
      %1115 = sbr.rel (0) target = $region61
    $region60: #{tpu_custom_call.1} parent=1 // pred_region
      %1116 = dma.done [#allocation9], 64
    $region61: #{tpu_custom_call.1} parent=1 // pred_fallthru
      _
    %1117 = vsyncpa [#allocation3], 1
    %1118 = vsyncpa [#allocation6], 1
    %1119 = vsyncpa [#allocation4], 1
    %1120 = vsyncpa [#allocation9], 1

</llo_original>
